<compile_context>
chip_gen: v7x
topology: tpu7x:2x2x1
jax: 0.10.0
libtpu: 0.0.40
codegen_flags: <defaults>
</compile_context>

<pallas_src>
import functools

import jax
import jax.numpy as jnp
from jax.experimental import pallas as pl
from jax.experimental.pallas import tpu as pltpu

EPS = 1e-5


# --------------------------------------------------------------------------
# Helpers
# --------------------------------------------------------------------------
def _round_up(v, m):
    return (v + m - 1) // m * m


def _vmem_limit_bytes():
    """Generation-aware scoped-VMEM limit (~75% of physical, capped at 100 MiB)."""
    cap = 64 << 20  # conservative fallback = v7x physical VMEM per TensorCore
    try:
        info = pltpu.get_tpu_info()
        cap = int(getattr(info, "vmem_capacity_bytes", cap)) or cap
    except Exception:
        pass
    return max(min(cap * 3 // 4, 100 << 20), 32 << 20)


def _vpu_fold(a):
    """(Cp, L) f32 -> (8, 128) partial sums.

    Only static vreg-aligned slices + elementwise adds (pure VPU); the single
    cross-lane/cross-sublane XLU reduce is deferred to the caller's finalize.
    """
    cp, l = a.shape
    r = a[0:8, :]
    for ci in range(1, cp // 8):
        r = r + a[ci * 8:(ci + 1) * 8, :]
    out = r[:, 0:128]
    for si in range(1, l // 128):
        out = out + r[:, si * 128:(si + 1) * 128]
    return out


def _channel_mix(x, w_s, use_bf16_mm):
    """(rstd-scaled, gamma-folded) (Cp,Cp) @ (Cp,L) channel mix on the MXU."""
    if use_bf16_mm:
        # bf16 MXU matmul, f32 accumulation (native MXU dtype on v5e/v6e/v7x).
        return jnp.dot(w_s.astype(jnp.bfloat16), x.astype(jnp.bfloat16),
                       preferred_element_type=jnp.float32)
    return jnp.dot(w_s.astype(jnp.float32), x.astype(jnp.float32),
                   preferred_element_type=jnp.float32)


# --------------------------------------------------------------------------
# Fused kernel: stats + normalized channel mix, one HBM read / write of x.
# --------------------------------------------------------------------------
def _fused_kernel(x_ref, w_ref, rowsum_ref, bias_ref, o_ref, *,
                  inv_count, use_bf16_mm):
    x = x_ref[0]                                        # (Cp, HWp), input dtype
    xf = x.astype(jnp.float32)

    # Per-sample stats: VPU-fold to one (8,128) vreg, one XLU reduce each.
    s = jnp.sum(_vpu_fold(xf), keepdims=True)           # (1, 1)
    q = jnp.sum(_vpu_fold(xf * xf), keepdims=True)      # (1, 1)
    mean = s * inv_count
    var = q * inv_count - mean * mean                   # biased var (PyTorch GN)
    rstd = jax.lax.rsqrt(var + EPS)

    w_s = w_ref[...] * rstd                             # fold 1/std into (Cp,Cp)
    shift = bias_ref[...] - (mean * rstd) * rowsum_ref[...]   # (Cp, 1)

    acc = _channel_mix(x, w_s, use_bf16_mm)             # (Cp, HWp) f32
    o_ref[0] = (acc + shift).astype(o_ref.dtype)


# --------------------------------------------------------------------------
# Two-pass fallback, pass 1: per-sample mean / inv_std.
# --------------------------------------------------------------------------
def _stats_kernel(x_ref, mean_ref, rstd_ref, sum_ref, sq_ref, *, inv_count):
    h = pl.program_id(1)

    @pl.when(h == 0)
    def _init():
        sum_ref[...] = jnp.zeros_like(sum_ref)
        sq_ref[...] = jnp.zeros_like(sq_ref)

    x = x_ref[0].astype(jnp.float32)                    # (Cp, t_hw)
    sum_ref[...] += _vpu_fold(x)                        # (8,128) VPU accumulate
    sq_ref[...] += _vpu_fold(x * x)

    @pl.when(h == pl.num_programs(1) - 1)
    def _finalize():
        s = jnp.sum(sum_ref[...], keepdims=True)        # single XLU reduce/sample
        q = jnp.sum(sq_ref[...], keepdims=True)
        mean = s * inv_count
        var = q * inv_count - mean * mean
        mean_ref[0] = mean
        rstd_ref[0] = jax.lax.rsqrt(var + EPS)


# --------------------------------------------------------------------------
# Two-pass fallback, pass 2: y = (rstd * W') @ x + shift.
# --------------------------------------------------------------------------
def _apply_kernel(x_ref, mean_ref, rstd_ref, w_ref, rowsum_ref, bias_ref, o_ref,
                  *, use_bf16_mm):
    mean = mean_ref[0]                                  # (1, 1) f32
    rstd = rstd_ref[0]                                  # (1, 1) f32
    w_s = w_ref[...] * rstd                             # (Cp, Cp), Cp^2 work only
    shift = bias_ref[...] - (mean * rstd) * rowsum_ref[...]   # (Cp, 1)
    acc = _channel_mix(x_ref[0], w_s, use_bf16_mm)      # MXU even for tiny K
    o_ref[0] = (acc + shift).astype(o_ref.dtype)


# --------------------------------------------------------------------------
# Tiling / wrapper
# --------------------------------------------------------------------------
def _pick_hw_tile(hw128, per_col_bytes, vmem_limit):
    """Spatial tile (mult. of 128) + padded extent for the two-pass path.

    Prefers a large tile that divides hw128; otherwise allows up to ~12.5%
    extra zero padding so the tile never collapses to 128 lanes.
    """
    cap = int(vmem_limit * 0.6) // max(1, per_col_bytes) // 128 * 128
    cap = max(128, min(cap, 2048, hw128))
    best_div, t = 128, 128
    while t <= cap:
        if hw128 % t == 0:
            best_div = t
        t += 128
    if best_div >= 512:
        return best_div, hw128
    t = cap
    while t > best_div:
        hwp = _round_up(hw128, t)
        if hwp * 8 <= hw128 * 9:            # <= 12.5% extra padding
            return t, hwp
        t -= 128
    return best_div, hw128


def prenorm_forward(x_nchw, gamma, beta, conv_w, conv_b, *, force_two_pass=False):
    """PreNorm forward: GroupNorm(1, C)(x) then 1x1 Conv2d(C, C). x: (N,C,H,W)."""
    N, C, H, W = x_nchw.shape
    HW = H * W
    out_dtype = x_nchw.dtype
    in_item = jnp.dtype(x_nchw.dtype).itemsize
    out_item = jnp.dtype(out_dtype).itemsize

    # ---- fold GroupNorm affine + conv bias into the conv weights (f32) -------
    w = conv_w.reshape(C, C).astype(jnp.float32)                  # (C_out, C_in)
    w_fold = w * gamma.reshape(1, C).astype(jnp.float32)          # W' = W diag(g)
    bias_fold = w @ beta.astype(jnp.float32) + conv_b.astype(jnp.float32)
    rowsum = jnp.sum(w_fold, axis=1)

    # ---- dtype-aware padding: lanes %128, sublanes % (8 / 16 / 32) -----------
    sub = max(8, 32 // in_item)            # f32 -> 8, bf16 -> 16, int8/fp8 -> 32
    Cp = _round_up(C, sub)
    HW128 = _round_up(HW, 128)

    vmem_limit = _vmem_limit_bytes()
    inv_count = 1.0 / float(C * HW)        # true element count (padding is zero)
    # bf16 MXU path for bf16 inputs; for very large C, f32 inputs also take the
    # bf16 MXU path (slight precision trade-off, f32 accumulation kept).
    use_bf16_mm = (x_nchw.dtype == jnp.bfloat16) or (C >= 256)

    # Per-lane-column VMEM cost of one pipelined step:
    #   2x input + 2x output double-buffers + ~2 f32 temporaries.
    per_col = Cp * (2 * in_item + 2 * out_item + 8)
    fused_ok = (per_col * HW128 <= int(vmem_limit * 0.8)) and not force_two_pass

    if fused_ok:
        t_hw, HWp = HW128, HW128
    else:
        t_hw, HWp = _pick_hw_tile(HW128, per_col, vmem_limit)

    # ---- pad operands ---------------------------------------------------------
    x = x_nchw.reshape(N, C, HW)
    if (Cp, HWp) != (C, HW):
        x = jnp.pad(x, ((0, 0), (0, Cp - C), (0, HWp - HW)))
    if Cp != C:
        w_fold = jnp.pad(w_fold, ((0, Cp - C), (0, Cp - C)))
        bias_fold = jnp.pad(bias_fold, ((0, Cp - C),))
        rowsum = jnp.pad(rowsum, ((0, Cp - C),))
    bias_fold = bias_fold.reshape(Cp, 1)
    rowsum = rowsum.reshape(Cp, 1)

    if fused_ok:
        # ---- fused single pass: x read once, written once --------------------
        kernel = functools.partial(_fused_kernel, inv_count=inv_count,
                                   use_bf16_mm=use_bf16_mm)
        out = pl.pallas_call(
            kernel,
            out_shape=jax.ShapeDtypeStruct((N, Cp, HWp), out_dtype),
            grid_spec=pltpu.PrefetchScalarGridSpec(
                num_scalar_prefetch=0,
                grid=(N,),
                in_specs=[
                    pl.BlockSpec((1, Cp, HWp), lambda n: (n, 0, 0)),
                    pl.BlockSpec((Cp, Cp), lambda n: (0, 0)),
                    pl.BlockSpec((Cp, 1), lambda n: (0, 0)),
                    pl.BlockSpec((Cp, 1), lambda n: (0, 0)),
                ],
                out_specs=pl.BlockSpec((1, Cp, HWp), lambda n: (n, 0, 0)),
            ),
            compiler_params=pltpu.CompilerParams(
                dimension_semantics=("parallel",),
                vmem_limit_bytes=vmem_limit),
        )(x, w_fold, rowsum, bias_fold)
        return out[:, :C, :HW].reshape(N, C, H, W)

    # ---- two-pass fallback (sample does not fit in VMEM) ----------------------
    n_hw = HWp // t_hw

    stats_kernel = functools.partial(_stats_kernel, inv_count=inv_count)
    mean, rstd = pl.pallas_call(
        stats_kernel,
        out_shape=(
            jax.ShapeDtypeStruct((N, 1, 1), jnp.float32),
            jax.ShapeDtypeStruct((N, 1, 1), jnp.float32),
        ),
        grid_spec=pltpu.PrefetchScalarGridSpec(
            num_scalar_prefetch=0,
            grid=(N, n_hw),
            in_specs=[pl.BlockSpec((1, Cp, t_hw), lambda n, h: (n, 0, h))],
            out_specs=(
                pl.BlockSpec((1, 1, 1), lambda n, h: (n, 0, 0)),
                pl.BlockSpec((1, 1, 1), lambda n, h: (n, 0, 0)),
            ),
            scratch_shapes=[
                pltpu.VMEM((8, 128), jnp.float32),   # partial sums  (VPU adds)
                pltpu.VMEM((8, 128), jnp.float32),   # partial sumsq (VPU adds)
            ],
        ),
        compiler_params=pltpu.CompilerParams(
            dimension_semantics=("parallel", "arbitrary"),
            vmem_limit_bytes=vmem_limit),
    )(x)

    apply_kernel = functools.partial(_apply_kernel, use_bf16_mm=use_bf16_mm)
    out = pl.pallas_call(
        apply_kernel,
        out_shape=jax.ShapeDtypeStruct((N, Cp, HWp), out_dtype),
        grid_spec=pltpu.PrefetchScalarGridSpec(
            num_scalar_prefetch=0,
            grid=(N, n_hw),
            in_specs=[
                pl.BlockSpec((1, Cp, t_hw), lambda n, h: (n, 0, h)),
                pl.BlockSpec((1, 1, 1), lambda n, h: (n, 0, 0)),
                pl.BlockSpec((1, 1, 1), lambda n, h: (n, 0, 0)),
                pl.BlockSpec((Cp, Cp), lambda n, h: (0, 0)),
                pl.BlockSpec((Cp, 1), lambda n, h: (0, 0)),
                pl.BlockSpec((Cp, 1), lambda n, h: (0, 0)),
            ],
            out_specs=pl.BlockSpec((1, Cp, t_hw), lambda n, h: (n, 0, h)),
        ),
        compiler_params=pltpu.CompilerParams(
            dimension_semantics=("parallel", "parallel"),
            vmem_limit_bytes=vmem_limit),
    )(x, mean, rstd, w_fold, rowsum, bias_fold)

    return out[:, :C, :HW].reshape(N, C, H, W)


# --------------------------------------------------------------------------
# Pure-JAX reference (GroupNorm(1, C) + 1x1 conv) for the sanity check.
# --------------------------------------------------------------------------
def _reference(x_nchw, gamma, beta, conv_w, conv_b):
    N, C, H, W = x_nchw.shape
    xr = x_nchw.reshape(N, -1)
    mean = xr.mean(axis=1).reshape(N, 1, 1, 1)
    var = ((xr - xr.mean(axis=1, keepdims=True)) ** 2).mean(axis=1).reshape(N, 1, 1, 1)
    xh = (x_nchw - mean) / jnp.sqrt(var + EPS)
    xn = xh * gamma.reshape(1, C, 1, 1) + beta.reshape(1, C, 1, 1)
    w = conv_w.reshape(C, C)
    return jnp.einsum("oc,nchw->nohw", w, xn) + conv_b.reshape(1, C, 1, 1)


if __name__ == "__main__":
    key = jax.random.PRNGKey(0)
    N, C, H, W = 2, 4, 16, 16

    k_x, k_g, k_b, k_w, k_cb = jax.random.split(key, 5)
    x = jax.random.normal(k_x, (N, C, H, W), dtype=jnp.float32)

    # GroupNorm(1, C) parameters (perturb so the affine path is exercised).
    gamma = jnp.ones((C,), jnp.float32) + 0.1 * jax.random.normal(k_g, (C,), jnp.float32)
    beta = 0.1 * jax.random.normal(k_b, (C,), jnp.float32)

    # fn = Conv2d(C, C, kernel_size=1) parameters.
    conv_w = jax.random.normal(k_w, (C, C, 1, 1), jnp.float32) * (1.0 / jnp.sqrt(C))
    conv_b = 0.05 * jax.random.normal(k_cb, (C,), jnp.float32)

    ref = _reference(x, gamma, beta, conv_w, conv_b)

    # Fused single-pass path (default at this shape).
    out = jax.block_until_ready(prenorm_forward(x, gamma, beta, conv_w, conv_b))
    assert out.shape == (N, C, H, W)
    assert jnp.allclose(out, ref, atol=2e-4, rtol=1e-3), float(jnp.abs(out - ref).max())

    # Two-pass fallback path (used when a sample does not fit the VMEM budget).
    out2 = jax.block_until_ready(
        prenorm_forward(x, gamma, beta, conv_w, conv_b, force_two_pass=True))
    assert jnp.allclose(out2, ref, atol=2e-4, rtol=1e-3), float(jnp.abs(out2 - ref).max())

    print("KERNEL_OK")
</pallas_src>

<mosaic_0001>
module attributes {stable_mosaic.version = 11 : i64} {
  func.func @_fused_kernel(%arg0: i32, %arg1: memref<1x8x256xf32, #tpu.memory_space<vmem>>, %arg2: memref<8x8xf32, #tpu.memory_space<vmem>>, %arg3: memref<8x1xf32, #tpu.memory_space<vmem>>, %arg4: memref<8x1xf32, #tpu.memory_space<vmem>>, %arg5: memref<1x8x256xf32, #tpu.memory_space<vmem>>) attributes {dimension_semantics = [#tpu.dimension_semantics<parallel>], iteration_bounds = array<i64: 2>, scalar_prefetch = 0 : i64, scratch_operands = 0 : i64, tpu.core_type = #tpu.core_type<tc>, window_params = [{transform_indices = @transform_0, window_bounds = array<i64: 1, 8, 256>}, {pipeline_mode = #tpu.pipeline_mode<synchronous>, transform_indices = @transform_1, window_bounds = array<i64: 8, 8>}, {pipeline_mode = #tpu.pipeline_mode<synchronous>, transform_indices = @transform_2, window_bounds = array<i64: 8, 1>}, {pipeline_mode = #tpu.pipeline_mode<synchronous>, transform_indices = @transform_3, window_bounds = array<i64: 8, 1>}, {transform_indices = @transform_4, window_bounds = array<i64: 1, 8, 256>}]} {
    %c0 = arith.constant 0 : index
    %c0_0 = arith.constant 0 : index
    %c0_1 = arith.constant 0 : index
    %0 = vector.load %arg1[%c0, %c0_0, %c0_1] : memref<1x8x256xf32, #tpu.memory_space<vmem>>, vector<1x8x256xf32>
    %1 = vector.shape_cast %0 : vector<1x8x256xf32> to vector<8x256xf32>
    %2 = vector.extract_strided_slice %1 {offsets = [0, 0], sizes = [8, 128], strides = [1, 1]} : vector<8x256xf32> to vector<8x128xf32>
    %3 = vector.extract_strided_slice %1 {offsets = [0, 128], sizes = [8, 128], strides = [1, 1]} : vector<8x256xf32> to vector<8x128xf32>
    %4 = arith.addf %2, %3 : vector<8x128xf32>
    %5 = vector.shape_cast %4 : vector<8x128xf32> to vector<1x8x128xf32>
    %cst = arith.constant dense<0.000000e+00> : vector<1xf32>
    %6 = vector.multi_reduction <add>, %5, %cst [1, 2] : vector<1x8x128xf32> to vector<1xf32>
    %7 = vector.shape_cast %6 : vector<1xf32> to vector<1x1x1xf32>
    %8 = vector.extract %7[0, 0, 0] : f32 from vector<1x1x1xf32>
    %9 = vector.broadcast %8 : f32 to vector<1x1xf32>
    %10 = arith.mulf %1, %1 : vector<8x256xf32>
    %11 = vector.extract_strided_slice %10 {offsets = [0, 0], sizes = [8, 128], strides = [1, 1]} : vector<8x256xf32> to vector<8x128xf32>
    %12 = vector.extract_strided_slice %10 {offsets = [0, 128], sizes = [8, 128], strides = [1, 1]} : vector<8x256xf32> to vector<8x128xf32>
    %13 = arith.addf %11, %12 : vector<8x128xf32>
    %14 = vector.shape_cast %13 : vector<8x128xf32> to vector<1x8x128xf32>
    %cst_2 = arith.constant dense<0.000000e+00> : vector<1xf32>
    %15 = vector.multi_reduction <add>, %14, %cst_2 [1, 2] : vector<1x8x128xf32> to vector<1xf32>
    %16 = vector.shape_cast %15 : vector<1xf32> to vector<1x1x1xf32>
    %17 = vector.extract %16[0, 0, 0] : f32 from vector<1x1x1xf32>
    %18 = vector.broadcast %17 : f32 to vector<1x1xf32>
    %cst_3 = arith.constant 9.765625E-4 : f32
    %19 = vector.broadcast %cst_3 : f32 to vector<1x1xf32>
    %20 = arith.mulf %9, %19 : vector<1x1xf32>
    %cst_4 = arith.constant 9.765625E-4 : f32
    %21 = vector.broadcast %cst_4 : f32 to vector<1x1xf32>
    %22 = arith.mulf %18, %21 : vector<1x1xf32>
    %23 = arith.mulf %20, %20 : vector<1x1xf32>
    %24 = arith.subf %22, %23 : vector<1x1xf32>
    %cst_5 = arith.constant 9.99999974E-6 : f32
    %25 = vector.broadcast %cst_5 : f32 to vector<1x1xf32>
    %26 = arith.addf %24, %25 : vector<1x1xf32>
    %27 = math.rsqrt %26 : vector<1x1xf32>
    %c0_6 = arith.constant 0 : index
    %c0_7 = arith.constant 0 : index
    %28 = vector.load %arg2[%c0_6, %c0_7] : memref<8x8xf32, #tpu.memory_space<vmem>>, vector<8x8xf32>
    %29 = vector.broadcast %27 : vector<1x1xf32> to vector<8x8xf32>
    %30 = arith.mulf %28, %29 : vector<8x8xf32>
    %c0_8 = arith.constant 0 : index
    %c0_9 = arith.constant 0 : index
    %31 = vector.load %arg4[%c0_8, %c0_9] : memref<8x1xf32, #tpu.memory_space<vmem>>, vector<8x1xf32>
    %32 = arith.mulf %20, %27 : vector<1x1xf32>
    %c0_10 = arith.constant 0 : index
    %c0_11 = arith.constant 0 : index
    %33 = vector.load %arg3[%c0_10, %c0_11] : memref<8x1xf32, #tpu.memory_space<vmem>>, vector<8x1xf32>
    %34 = vector.broadcast %32 : vector<1x1xf32> to vector<8x1xf32>
    %35 = arith.mulf %34, %33 : vector<8x1xf32>
    %36 = arith.subf %31, %35 : vector<8x1xf32>
    %cst_12 = arith.constant dense<0.000000e+00> : vector<8x256xf32>
    %37 = tpu.matmul %30, %1, %cst_12 {dimension_numbers = #tpu.dot_dimension_numbers<[1], [0], [0], [1], [0, 0, 1, 1], [], []>} : vector<8x8xf32>, vector<8x256xf32>, vector<8x256xf32> -> vector<8x256xf32>
    %38 = vector.broadcast %36 : vector<8x1xf32> to vector<8x256xf32>
    %39 = arith.addf %37, %38 : vector<8x256xf32>
    %c0_13 = arith.constant 0 : index
    %c0_14 = arith.constant 0 : index
    %c0_15 = arith.constant 0 : index
    %40 = vector.load %arg5[%c0_13, %c0_14, %c0_15] : memref<1x8x256xf32, #tpu.memory_space<vmem>>, vector<1x8x256xf32>
    %41 = vector.shape_cast %40 : vector<1x8x256xf32> to vector<8x256xf32>
    %42 = vector.shape_cast %39 : vector<8x256xf32> to vector<1x8x256xf32>
    tpu.vector_store %arg5[%c0_13, %c0_14, %c0_15], %42 {strides = array<i32>} : memref<1x8x256xf32, #tpu.memory_space<vmem>>, vector<1x8x256xf32>,
    return
  }
  func.func @transform_0(%arg0: i32) -> (i32, i32, i32) {
    %c0_i32 = arith.constant 0 : i32
    %c0_i32_0 = arith.constant 0 : i32
    %c0_i32_1 = arith.constant 0 : i32
    return %arg0, %c0_i32, %c0_i32_0 : i32, i32, i32
  }
  func.func @transform_1(%arg0: i32) -> (i32, i32) {
    %c0_i32 = arith.constant 0 : i32
    %c0_i32_0 = arith.constant 0 : i32
    %c0_i32_1 = arith.constant 0 : i32
    return %c0_i32, %c0_i32_0 : i32, i32
  }
  func.func @transform_2(%arg0: i32) -> (i32, i32) {
    %c0_i32 = arith.constant 0 : i32
    %c0_i32_0 = arith.constant 0 : i32
    %c0_i32_1 = arith.constant 0 : i32
    return %c0_i32, %c0_i32_0 : i32, i32
  }
  func.func @transform_3(%arg0: i32) -> (i32, i32) {
    %c0_i32 = arith.constant 0 : i32
    %c0_i32_0 = arith.constant 0 : i32
    %c0_i32_1 = arith.constant 0 : i32
    return %c0_i32, %c0_i32_0 : i32, i32
  }
  func.func @transform_4(%arg0: i32) -> (i32, i32, i32) {
    %c0_i32 = arith.constant 0 : i32
    %c0_i32_0 = arith.constant 0 : i32
    %c0_i32_1 = arith.constant 0 : i32
    return %arg0, %c0_i32, %c0_i32_0 : i32, i32, i32
  }
}

</mosaic_0001>

<llo_original>
// kernel: tpu_custom_call.1
$region0: #{tpu_custom_call.1}
  #allocation0 [shape = 'u32[]', space=smem, size = 0x4, offset = 0x4, fixed_abs, tag = 'smem constant byte address 0x4 - core index']
  #allocation1 [shape = 'u32[144,128]{1,0:T(1,128)}', space=vmem, size = 0x12000, scoped, tag = 'internal scratch']
  %s0 = inlined_call_operand.hbm [shape: f32[2,8,256], index: 0, kind: input, shape index: {}]
  %s1 = inlined_call_operand.vmem [shape: f32[8,8], index: 1, kind: input, shape index: {}]
  %s2 = inlined_call_operand.vmem [shape: f32[8,1], index: 2, kind: input, shape index: {}]
  %s3 = inlined_call_operand.vmem [shape: f32[8,1], index: 3, kind: input, shape index: {}]
  %s4 = inlined_call_operand.hbm [shape: f32[2,8,256], index: 4, kind: output, shape index: {}]
  %s5 = sld [smem:[#allocation0]]
  $region53: #{tpu_custom_call.1} parent=0
    _
  %s7 = ssub.s32 1, %s5
  %s8 = scalar_select 0, %s7, %s5
  $region1: #{tpu_custom_call.1} parent=0
    #allocation2 [shape = 'u8[16384]{0}', space=vmem, size = 0x4000, scoped, tag = 'input window, operand 0']
    #allocation3 [shape = 's32[2]{0}', space=sflag, size = 0x8, scoped, tag = 'scoped memory for tpu_custom_call.1']
    #allocation4 [shape = 's32[2]{0}', space=sflag, size = 0x8, scoped, tag = 'scoped memory for tpu_custom_call.1']
    #allocation5 [shape = 'u8[16384]{0}', space=vmem, size = 0x4000, scoped, tag = 'output window, operand 0']
    %9 = vsyncpa [#allocation3], 0
    %s10 = scalar_lea.sflag [#allocation3], 1
    %11 = vsyncpa %s10, 0
    %12 = vsyncpa [#allocation4], 0
    %s13 = scalar_lea.sflag [#allocation4], 1
    %14 = vsyncpa %s13, 0
    loop: start=0, step=1, limit=4
    $region2: #{tpu_custom_call.1} parent=1 // loop_pre_header
      _
    $region3: #{tpu_custom_call.1} parent=1 // loop_header
      %s16 = sphi 0, %s20
      %p17 = scmp.ge.s32.totalorder %s16, 4
      %s26 = sphi 0, %s28
      %s29 = sphi 0, %s26
      %s30 = sphi 0, %s29
      %s46 = sphi 0, %s30
      %s50 = sphi 0, %s50
      %s52 = sphi 0, %s50
      %s53 = sphi 0, %s52
      %s67 = sphi 0, %s53
      %s71 = sphi 0, %s71
      %s73 = sphi 0, %s71
      %s74 = sphi 0, %s73
      %s88 = sphi 0, %s74
      %s92 = sphi 0, %s92
      %s94 = sphi 0, %s92
      %s95 = sphi 0, %s94
      %s109 = sphi 0, %s95
      %s115 = sphi 0, %s117
      %s118 = sphi 0, %s115
      %s119 = sphi 0, %s118
      %s135 = sphi 0, %s119
    $region4: #{tpu_custom_call.1} parent=1 // loop_header_branch
      %19 = sbr.rel (%p17) target = $region8
    $region5: #{tpu_custom_call.1} parent=1 // loop_body
      %s21 = ssub.s32 %s16, 1
      %s22 = ssub.s32 %s16, 2
      %s23 = sadd.s32 %s16, 1
      %s24 = ssub.s32 %s16, %s23
      %p25 = scmp.eq.s32.totalorder %s24, 0
      %s27 = sadd.s32 %s26, 1
      %s28 = scalar_select %p25, %s26, %s27
      %p31 = pneg %p25
      %p32 = scmp.eq.s32.totalorder %s16, 1
      %p33 = por %p31, %p32
      %p34 = scmp.ne.s32.totalorder %s26, %s29
      %p35 = scmp.eq.s32.totalorder %s16, 0
      %p36 = por %p34, %p35
      %p37 = scmp.ne.s32.totalorder %s26, %s29
      %p38 = scmp.eq.s32.totalorder %s21, 1
      %p39 = por %p37, %p38
      %p40 = scmp.ne.s32.totalorder %s29, %s30
      %p41 = scmp.eq.s32.totalorder %s21, 0
      %p42 = por %p40, %p41
      %p43 = scmp.ne.s32.totalorder %s29, %s30
      %p44 = scmp.eq.s32.totalorder %s22, 1
      %p45 = por %p43, %p44
      %p47 = scmp.ne.s32.totalorder %s30, %s46
      %p48 = scmp.eq.s32.totalorder %s22, 0
      %p49 = por %p47, %p48
      %s51 = sadd.s32 %s50, 1
      %p54 = scmp.eq.s32.totalorder %s16, 1
      %p55 = scmp.ne.s32.totalorder %s50, %s52
      %p56 = scmp.eq.s32.totalorder %s16, 0
      %p57 = por %p55, %p56
      %p58 = scmp.ne.s32.totalorder %s50, %s52
      %p59 = scmp.eq.s32.totalorder %s21, 1
      %p60 = por %p58, %p59
      %p61 = scmp.ne.s32.totalorder %s52, %s53
      %p62 = scmp.eq.s32.totalorder %s21, 0
      %p63 = por %p61, %p62
      %p64 = scmp.ne.s32.totalorder %s52, %s53
      %p65 = scmp.eq.s32.totalorder %s22, 1
      %p66 = por %p64, %p65
      %p68 = scmp.ne.s32.totalorder %s53, %s67
      %p69 = scmp.eq.s32.totalorder %s22, 0
      %p70 = por %p68, %p69
      %s72 = sadd.s32 %s71, 1
      %p75 = scmp.eq.s32.totalorder %s16, 1
      %p76 = scmp.ne.s32.totalorder %s71, %s73
      %p77 = scmp.eq.s32.totalorder %s16, 0
      %p78 = por %p76, %p77
      %p79 = scmp.ne.s32.totalorder %s71, %s73
      %p80 = scmp.eq.s32.totalorder %s21, 1
      %p81 = por %p79, %p80
      %p82 = scmp.ne.s32.totalorder %s73, %s74
      %p83 = scmp.eq.s32.totalorder %s21, 0
      %p84 = por %p82, %p83
      %p85 = scmp.ne.s32.totalorder %s73, %s74
      %p86 = scmp.eq.s32.totalorder %s22, 1
      %p87 = por %p85, %p86
      %p89 = scmp.ne.s32.totalorder %s74, %s88
      %p90 = scmp.eq.s32.totalorder %s22, 0
      %p91 = por %p89, %p90
      %s93 = sadd.s32 %s92, 1
      %p96 = scmp.eq.s32.totalorder %s16, 1
      %p97 = scmp.ne.s32.totalorder %s92, %s94
      %p98 = scmp.eq.s32.totalorder %s16, 0
      %p99 = por %p97, %p98
      %p100 = scmp.ne.s32.totalorder %s92, %s94
      %p101 = scmp.eq.s32.totalorder %s21, 1
      %p102 = por %p100, %p101
      %p103 = scmp.ne.s32.totalorder %s94, %s95
      %p104 = scmp.eq.s32.totalorder %s21, 0
      %p105 = por %p103, %p104
      %p106 = scmp.ne.s32.totalorder %s94, %s95
      %p107 = scmp.eq.s32.totalorder %s22, 1
      %p108 = por %p106, %p107
      %p110 = scmp.ne.s32.totalorder %s95, %s109
      %p111 = scmp.eq.s32.totalorder %s22, 0
      %p112 = por %p110, %p111
      %s113 = ssub.s32 %s16, %s23
      %p114 = scmp.eq.s32.totalorder %s113, 0
      %s116 = sadd.s32 %s115, 1
      %s117 = scalar_select %p114, %s115, %s116
      %p120 = pneg %p114
      %p121 = scmp.eq.s32.totalorder %s16, 1
      %p122 = por %p120, %p121
      %p123 = scmp.ne.s32.totalorder %s115, %s118
      %p124 = scmp.eq.s32.totalorder %s16, 0
      %p125 = por %p123, %p124
      %p126 = scmp.ne.s32.totalorder %s115, %s118
      %p127 = scmp.eq.s32.totalorder %s21, 1
      %p128 = por %p126, %p127
      %p129 = scmp.ne.s32.totalorder %s118, %s119
      %p130 = scmp.eq.s32.totalorder %s21, 0
      %p131 = por %p129, %p130
      %p132 = scmp.ne.s32.totalorder %s118, %s119
      %p133 = scmp.eq.s32.totalorder %s22, 1
      %p134 = por %p132, %p133
      %p136 = scmp.ne.s32.totalorder %s119, %s135
      %p137 = scmp.eq.s32.totalorder %s22, 0
      %p138 = por %p136, %p137
      %p139 = scmp.le.s32.totalorder 1, %s16
      %p140 = scmp.lt.s32.totalorder %s16, 3
      %p141 = pnand %p139, %p140
      %p142 = pneg %p141
      // Predicated region
      $region9: #{tpu_custom_call.1} parent=5 // pred_check
        _
      $region10: #{tpu_custom_call.1} parent=5 // pred_check_branch
        %144 = sbr.rel (%p141) target = $region12
      $region11: #{tpu_custom_call.1} parent=5 // pred_region
        %s145 = ssub.s32 %s16, 1
        // Predicated region
        $region13: #{tpu_custom_call.1} parent=11 // pred_check
          %p146 = pneg %p63
        $region14: #{tpu_custom_call.1} parent=11 // pred_check_branch
          %148 = sbr.rel (%p146) target = $region16
        $region15: #{tpu_custom_call.1} parent=11 // pred_region
          _
        $region16: #{tpu_custom_call.1} parent=11 // pred_fallthru
          _
        // Predicated region
        $region17: #{tpu_custom_call.1} parent=11 // pred_check
          %p149 = pneg %p84
        $region18: #{tpu_custom_call.1} parent=11 // pred_check_branch
          %151 = sbr.rel (%p149) target = $region20
        $region19: #{tpu_custom_call.1} parent=11 // pred_region
          _
        $region20: #{tpu_custom_call.1} parent=11 // pred_fallthru
          _
        // Predicated region
        $region21: #{tpu_custom_call.1} parent=11 // pred_check
          %p152 = pneg %p105
        $region22: #{tpu_custom_call.1} parent=11 // pred_check_branch
          %154 = sbr.rel (%p152) target = $region24
        $region23: #{tpu_custom_call.1} parent=11 // pred_region
          _
        $region24: #{tpu_custom_call.1} parent=11 // pred_fallthru
          _
      $region12: #{tpu_custom_call.1} parent=5 // pred_fallthru
        _
      %p155 = scmp.lt.s32.totalorder %s16, 2
      // Predicated region
      $region25: #{tpu_custom_call.1} parent=5 // pred_check
        %p156 = pneg %p155
      $region26: #{tpu_custom_call.1} parent=5 // pred_check_branch
        %158 = sbr.rel (%p156) target = $region28
      $region27: #{tpu_custom_call.1} parent=5 // pred_region
        // Predicated region
        $region29: #{tpu_custom_call.1} parent=27 // pred_check
          %p159 = pneg %p36
        $region30: #{tpu_custom_call.1} parent=27 // pred_check_branch
          %161 = sbr.rel (%p159) target = $region32
        $region31: #{tpu_custom_call.1} parent=27 // pred_region
          %s162 = sand.u32 %s26, 1
          %s163 = scalar_lea.sflag [#allocation3], %s162
          %s164 = sand.u32 %s26, 1
          %s165 = smul.addr %s164, 16
          %s166 = scalar_lea.vmem [#allocation2], %s165
          %s168 = ssub.s32 256, 256
          %169 = vsyncadd %s163, %s168
          %s170 = smul.addr %s16, 2
          %s171 = smul.addr %s170, 128
          %s172 = scalar_lea.hbm %s0, %s171
          %s174 = sshll.u32 %s166, 4
          %s175 = int_to_ptr.vmem [resolvable:$true] %s174
          %177 = dma.hbm_to_vmem [thread:$0]  %s172, 256, %s175, %s163
        $region32: #{tpu_custom_call.1} parent=27 // pred_fallthru
          _
      $region28: #{tpu_custom_call.1} parent=5 // pred_fallthru
        _
      %p178 = scmp.le.s32.totalorder 1, %s16
      %p179 = scmp.lt.s32.totalorder %s16, 3
      %p180 = pnand %p178, %p179
      %p181 = pneg %p180
      // Predicated region
      $region33: #{tpu_custom_call.1} parent=5 // pred_check
        _
      $region34: #{tpu_custom_call.1} parent=5 // pred_check_branch
        %183 = sbr.rel (%p180) target = $region36
      $region35: #{tpu_custom_call.1} parent=5 // pred_region
        %s184 = ssub.s32 %s16, 1
        %s185 = sand.u32 %s29, 1
        %s186 = scalar_lea.sflag [#allocation3], %s185
        %s187 = sand.u32 %s29, 1
        %s188 = smul.addr %s187, 16
        %s189 = scalar_lea.vmem [#allocation2], %s188
        // Predicated region
        $region37: #{tpu_custom_call.1} parent=35 // pred_check
          %p190 = pneg %p42
        $region38: #{tpu_custom_call.1} parent=35 // pred_check_branch
          %192 = sbr.rel (%p190) target = $region40
        $region39: #{tpu_custom_call.1} parent=35 // pred_region
          %193 = dma.done %s186, 256
        $region40: #{tpu_custom_call.1} parent=35 // pred_fallthru
          _
        %s194 = sand.u32 %s29, 1
        %s195 = scalar_lea.sflag [#allocation3], %s194
        %s196 = sand.u32 %s29, 1
        %s197 = smul.addr %s196, 16
        %s198 = scalar_lea.vmem [#allocation2], %s197
        %p199 = pneg %p42
        %p200 = pneg %p39
        %p201 = pneg %p63
        %p202 = pneg %p60
        %p203 = pneg %p84
        %p204 = pneg %p81
        %p205 = pneg %p105
        %p206 = pneg %p102
        %p207 = pneg %p131
        %p208 = pneg %p128
        %s209 = sand.u32 %s118, 1
        %s210 = scalar_lea.sflag [#allocation4], %s209
        %s211 = sand.u32 %s118, 1
        %s212 = smul.addr %s211, 16
        %s213 = scalar_lea.vmem [#allocation5], %s212
        %v214 = vld [vmem:[%s189] sm:$0xff]
        %v215 = vld [vmem:[%s189 + $0x8] sm:$0xff]
        %v216 = vadd.f32 %v214, %v215
        %217 = vadd.xlane.f32.xlu0 %v216
        %v218 = vpop.xlane.xlu0 %217
        %v219 = vrot.slane %v218, 4
        %v220 = vadd.f32 %v218, %v219
        %v221 = vrot.slane %v220, 2
        %v222 = vadd.f32 %v220, %v221
        %v223 = vrot.slane %v222, 1
        %v224 = vadd.f32 %v222, %v223
        %s225 = vtos %v224
        %v226 = vstv %s225
        %v227 = vmul.f32 %v214, %v214
        %v228 = vmul.f32 %v215, %v215
        %v229 = vadd.f32 %v227, %v228
        %230 = vadd.xlane.f32.xlu0 %v229
        %v231 = vpop.xlane.xlu0 %230
        %v232 = vrot.slane %v231, 4
        %v233 = vadd.f32 %v231, %v232
        %v234 = vrot.slane %v233, 2
        %v235 = vadd.f32 %v233, %v234
        %v236 = vrot.slane %v235, 1
        %v237 = vadd.f32 %v235, %v236
        %s238 = vtos %v237
        %v239 = vstv %s238
        %v240 = vmul.f32 %v226, 0.0009765625
        %v241 = vmul.f32 %v239, 0.0009765625
        %v242 = vmul.f32 %v240, %v240
        %v243 = vsub.f32 %v241, %v242
        %v244 = vadd.f32 %v243, 1e-05
        %v245 = vrsqrt.pop %v244
        %v246 = vld [vmem:[%s1] sm:$0xff]
        %v247 = vmul.f32 %v246, %v245
        %v248 = vld [vmem:[%s3] sm:$0xff]
        %v249 = vmul.f32 %v240, %v245
        %v250 = vld [vmem:[%s2] sm:$0xff]
        %v251 = vmul.f32 %v249, %v250
        %v252 = vsub.f32 %v248, %v251
        %254 = vset.pattern.permute.xlu0 0
        %255 = vperm.xlu0 %254, %v252
        %v256 = vpop.permute.xlu0 %255
        %vm258 = vcmask 64512
        %v260 = vsel %vm258, %v247, 0
        %262 = vmatprep.subr.mxu0 %v215
        %263 = vmatpush1.msra.mxu0 %v214
        %264 = vmatprep.subr.mxu0 0.0
        %265 = vmatpush1.msra.mxu0 0.0
        %266 = vmatprep.subr.mxu0 0.0
        %267 = vmatpush1.msra.mxu0 0.0
        %268 = vmatprep.subr.mxu0 0.0
        %269 = vmatpush1.msra.mxu0 0.0
        %270 = vmatprep.subr.mxu0 0.0
        %271 = vmatpush1.msra.mxu0 0.0
        %272 = vmatprep.subr.mxu0 0.0
        %273 = vmatpush1.msra.mxu0 0.0
        %274 = vmatprep.subr.mxu0 0.0
        %275 = vmatpush1.msra.mxu0 0.0
        %276 = vmatprep.subr.mxu0 0.0
        %277 = vmatpush1.msra.mxu0 0.0
        %278 = vmatprep.subr.mxu0 0.0
        %279 = vmatpush1.msra.mxu0 0.0
        %280 = vmatprep.subr.mxu0 0.0
        %281 = vmatpush1.msra.mxu0 0.0
        %282 = vmatprep.subr.mxu0 0.0
        %283 = vmatpush1.msra.mxu0 0.0
        %284 = vmatprep.subr.mxu0 0.0
        %285 = vmatpush1.msra.mxu0 0.0
        %286 = vmatprep.subr.mxu0 0.0
        %287 = vmatpush1.msra.mxu0 0.0
        %288 = vmatprep.subr.mxu0 0.0
        %289 = vmatpush1.msra.mxu0 0.0
        %290 = vmatprep.subr.mxu0 0.0
        %291 = vmatpush1.msra.mxu0 0.0
        %292 = vmatprep.subr.mxu0 0.0
        %293 = vmatpush1.msra.mxu0 0.0
        %294 = vmatprep.subr.mxu0 0.0
        %295 = vmatpush1.msra.mxu0 0.0
        %296 = vmatprep.subr.mxu0 0.0
        %297 = vmatpush1.msra.mxu0 0.0
        %298 = vmatprep.subr.mxu0 0.0
        %299 = vmatpush1.msra.mxu0 0.0
        %300 = vmatprep.subr.mxu0 0.0
        %301 = vmatpush1.msra.mxu0 0.0
        %302 = vmatprep.subr.mxu0 0.0
        %303 = vmatpush1.msra.mxu0 0.0
        %304 = vmatprep.subr.mxu0 0.0
        %305 = vmatpush1.msra.mxu0 0.0
        %306 = vmatprep.subr.mxu0 0.0
        %307 = vmatpush1.msra.mxu0 0.0
        %308 = vmatprep.subr.mxu0 0.0
        %309 = vmatpush1.msra.mxu0 0.0
        %310 = vmatprep.subr.mxu0 0.0
        %311 = vmatpush1.msra.mxu0 0.0
        %312 = vmatprep.subr.mxu0 0.0
        %313 = vmatpush1.msra.mxu0 0.0
        %314 = vmatprep.subr.mxu0 0.0
        %315 = vmatpush1.msra.mxu0 0.0
        %316 = vmatprep.subr.mxu0 0.0
        %317 = vmatpush1.msra.mxu0 0.0
        %318 = vmatprep.subr.mxu0 0.0
        %319 = vmatpush1.msra.mxu0 0.0
        %320 = vmatprep.subr.mxu0 0.0
        %321 = vmatpush1.msra.mxu0 0.0
        %322 = vmatprep.subr.mxu0 0.0
        %323 = vmatpush1.msra.mxu0 0.0
        %324 = vmatprep.subr.mxu0 0.0
        %325 = vmatpush1.msra.mxu0 0.0
        %326 = vmatprep.mubr.f32.mxu0 0.0
        %327 = vmatmul.mubr.f32.gmra.mrb[0].mxu0 %v260
        %v328 = vpop.f32.mrb[0].mxu0
        %v329 = vadd.f32 %v256, %v328
        %v330 = vpop.f32.mrb[0].mxu0
        %v331 = vadd.f32 %v256, %v330
        %332 = vdwg.mxu0
        %333 = vst [vmem:[%s213] sm:$0xff] %v329
        %334 = vst [vmem:[%s213 + $0x8] sm:$0xff] %v331
        %s335 = sand.u32 %s118, 1
        %s336 = scalar_lea.sflag [#allocation4], %s335
        %s337 = sand.u32 %s118, 1
        %s338 = smul.addr %s337, 16
        %s339 = scalar_lea.vmem [#allocation5], %s338
        // Predicated region
        $region41: #{tpu_custom_call.1} parent=35 // pred_check
          %p340 = pneg %p128
        $region42: #{tpu_custom_call.1} parent=35 // pred_check_branch
          %342 = sbr.rel (%p340) target = $region44
        $region43: #{tpu_custom_call.1} parent=35 // pred_region
          %s344 = ssub.s32 256, 256
          %345 = vsyncadd %s336, %s344
          %s346 = smul.addr %s21, 2
          %s347 = smul.addr %s346, 128
          %s348 = scalar_lea.hbm %s4, %s347
          %s350 = sshll.u32 %s339, 4
          %s351 = int_to_ptr.vmem [resolvable:$true] %s350
          %353 = dma.vmem_to_hbm [thread:$0]  %s351, 256, %s348, %s336
        $region44: #{tpu_custom_call.1} parent=35 // pred_fallthru
          _
      $region36: #{tpu_custom_call.1} parent=5 // pred_fallthru
        _
      %p354 = scmp.le.s32.totalorder 2, %s16
      // Predicated region
      $region45: #{tpu_custom_call.1} parent=5 // pred_check
        %p355 = pneg %p354
      $region46: #{tpu_custom_call.1} parent=5 // pred_check_branch
        %357 = sbr.rel (%p355) target = $region48
      $region47: #{tpu_custom_call.1} parent=5 // pred_region
        %s358 = ssub.s32 %s16, 2
        // Predicated region
        $region49: #{tpu_custom_call.1} parent=47 // pred_check
          %p359 = pneg %p134
        $region50: #{tpu_custom_call.1} parent=47 // pred_check_branch
          %361 = sbr.rel (%p359) target = $region52
        $region51: #{tpu_custom_call.1} parent=47 // pred_region
          %s362 = sand.u32 %s119, 1
          %s363 = scalar_lea.sflag [#allocation4], %s362
          %s364 = sand.u32 %s119, 1
          %s365 = smul.addr %s364, 16
          %s366 = scalar_lea.vmem [#allocation5], %s365
          %367 = dma.done %s363, 256
        $region52: #{tpu_custom_call.1} parent=47 // pred_fallthru
          _
      $region48: #{tpu_custom_call.1} parent=5 // pred_fallthru
        _
    $region6: #{tpu_custom_call.1} parent=1 // loop_footer
      %s20 = sadd.s32 1, %s16
    $region7: #{tpu_custom_call.1} parent=1 // loop_footer_branch
      %15 = sbr.rel target = $region3
    $region8: #{tpu_custom_call.1} parent=1 // loop_exit
      _
    %368 = vsyncpa [#allocation3], 1
    %s369 = scalar_lea.sflag [#allocation3], 1
    %370 = vsyncpa %s369, 1
    %371 = vsyncpa [#allocation4], 1
    %s372 = scalar_lea.sflag [#allocation4], 1
    %373 = vsyncpa %s372, 1

</llo_original>
